<compile_context>
chip_gen: v6e
topology: v6e:2x2x1
jax: 0.10.0
libtpu: 0.0.40
codegen_flags: <defaults>
</compile_context>

<pallas_src>
import functools

import jax
import jax.numpy as jnp
from jax import lax
from jax.experimental import pallas as pl
from jax.experimental.pallas import tpu as pltpu

_MAX_VAL = 1e4  # kornia morphology default max_val with 'geodesic' border


def _images_per_block(n_imgs, H, W, budget_bytes):
    """Divisor of n_imgs giving a lane-legal block (ipb*W % 128 == 0 or full
    extent) whose f32 block fits `budget_bytes`; largest such, else the
    smallest legal one."""
    legal = [ipb for ipb in range(1, n_imgs + 1)
             if n_imgs % ipb == 0 and ((ipb * W) % 128 == 0 or ipb == n_imgs)]
    within = [ipb for ipb in legal if ipb * W * H * 4 <= budget_bytes]
    if within:
        return max(within)
    return min(legal)


def _connect_loss_kernel(img_ref, lab_ref, diff_ref, nnz_ref, *,
                         H, W, inv_ndx, inv_ndy):
    x_img = img_ref[...]            # (H, BW) f32, BW = images_per_block * W
    x_lab = lab_ref[...]
    BW = x_img.shape[1]

    # Per-image boundary masks (each contiguous W-wide lane segment is one
    # image row in the packed layout).
    row = lax.broadcasted_iota(jnp.int32, (H, BW), 0)
    col = lax.broadcasted_iota(jnp.int32, (H, BW), 1) % W
    top = row == 0
    bot = row == (H - 1)
    lft = col == 0
    rgt = col == (W - 1)

    # pltpu.roll follows jnp.roll semantics: y[i] = x[(i - shift) % n].
    up_sh = 1                 # y[h] = x[h-1]
    dn_sh = H - 1             # y[h] = x[h+1]
    lf_sh = 1                 # y[w] = x[w-1]
    rt_sh = BW - 1            # y[w] = x[w+1]

    def nbrs(x, pad):
        n_up = jnp.where(top, pad, pltpu.roll(x, up_sh, axis=0))
        n_dn = jnp.where(bot, pad, pltpu.roll(x, dn_sh, axis=0))
        n_lf = jnp.where(lft, pad, pltpu.roll(x, lf_sh, axis=1))
        n_rt = jnp.where(rgt, pad, pltpu.roll(x, rt_sh, axis=1))
        return n_up, n_dn, n_lf, n_rt

    def opening(x):
        # erosion: min over 3x3 cross, geodesic border (+max_val OOB fill)
        u, d, l, r = nbrs(x, _MAX_VAL)
        er = jnp.minimum(jnp.minimum(jnp.minimum(jnp.minimum(x, u), d), l), r)
        # dilation of the eroded image: max over cross (-max_val OOB fill)
        u, d, l, r = nbrs(er, -_MAX_VAL)
        return jnp.maximum(jnp.maximum(jnp.maximum(jnp.maximum(er, u), d), l), r)

    def act(x):
        z = 10.0 * (x - 0.5)
        return pl.reciprocal(1.0 + jnp.exp(-z), approx=False)

    p_img = act(opening(x_img))
    p_lab = act(opening(x_lab))

    # Forward differences; per-image boundary terms masked to zero so the sums
    # cover exactly H*(W-1) / (H-1)*W elements per image (== torch slicing).
    def grads(x):
        dx = jnp.where(rgt, 0.0, pltpu.roll(x, rt_sh, axis=1) - x)
        dy = jnp.where(bot, 0.0, pltpu.roll(x, dn_sh, axis=0) - x)
        return jnp.abs(dx), jnp.abs(dy)

    adx_i, ady_i = grads(p_img)
    adx_l, ady_l = grads(p_lab)

    # Fused reduction: this block's contribution to
    # (smoothness_img - smoothness_lab), with global mean denominators folded
    # in, collapses to a single sum.  count_nonzero is a second sum.
    contrib = (adx_i - adx_l) * inv_ndx + (ady_i - ady_l) * inv_ndy
    pdiff = jnp.sum(contrib)
    pnnz = jnp.sum((p_lab != 0.0).astype(jnp.float32))

    # Lane-dense, (8,128)-aligned per-block outputs (scalar splat -> unmasked vst).
    diff_ref[...] = jnp.full(diff_ref.shape, pdiff, dtype=jnp.float32)
    nnz_ref[...] = jnp.full(nnz_ref.shape, pnnz, dtype=jnp.float32)


def connect_loss(img, lab, *, block_vmem_budget_bytes=1 << 20):
    """img, lab: float NCHW tensors of identical shape. Returns scalar loss."""
    assert img.shape == lab.shape and img.ndim == 4
    B, C, H, W = img.shape
    NC = B * C
    img = img.astype(jnp.float32)
    lab = lab.astype(jnp.float32)

    # Lane-dense 2D view: (H, B*C*W).  Each contiguous W-wide lane segment is
    # one image row; per-image boundaries are handled with masks in the kernel.
    img2 = jnp.transpose(img, (2, 0, 1, 3)).reshape(H, NC * W)
    lab2 = jnp.transpose(lab, (2, 0, 1, 3)).reshape(H, NC * W)

    ipb = _images_per_block(NC, H, W, block_vmem_budget_bytes)
    bw = ipb * W
    n_blocks = NC // ipb

    inv_ndx = 1.0 / float(NC * H * (W - 1))
    inv_ndy = 1.0 / float(NC * (H - 1) * W)

    kernel = functools.partial(_connect_loss_kernel, H=H, W=W,
                               inv_ndx=inv_ndx, inv_ndy=inv_ndy)

    diff_parts, nnz_parts = pl.pallas_call(
        kernel,
        out_shape=(
            jax.ShapeDtypeStruct((n_blocks, 8, 128), jnp.float32),
            jax.ShapeDtypeStruct((n_blocks, 8, 128), jnp.float32),
        ),
        grid_spec=pltpu.PrefetchScalarGridSpec(
            num_scalar_prefetch=0,
            grid=(n_blocks,),
            in_specs=[
                pl.BlockSpec((H, bw), lambda i: (0, i)),
                pl.BlockSpec((H, bw), lambda i: (0, i)),
            ],
            out_specs=(
                pl.BlockSpec((1, 8, 128), lambda i: (i, 0, 0)),
                pl.BlockSpec((1, 8, 128), lambda i: (i, 0, 0)),
            ),
        ),
        compiler_params=pltpu.CompilerParams(
            dimension_semantics=("parallel",),
            vmem_limit_bytes=32 * 1024 * 1024,
        ),
    )(img2, lab2)

    # Tiny final combine (one cross-block reduce) outside the kernel.
    diff_total = jnp.sum(diff_parts[:, 0, 0])
    nnz_total = jnp.sum(nnz_parts[:, 0, 0])
    return jnp.abs(diff_total) / nnz_total


if __name__ == "__main__":
    key = jax.random.PRNGKey(0)
    k_img, k_lab = jax.random.split(key)

    B, C, H, W = 2, 4, 16, 16
    img = jax.random.uniform(k_img, (B, C, H, W), dtype=jnp.float32)
    # binary-ish label map, like a segmentation mask
    lab = (jax.random.uniform(k_lab, (B, C, H, W)) > 0.5).astype(jnp.float32)

    loss = jax.jit(connect_loss)(img, lab)
    jax.block_until_ready(loss)
    print("KERNEL_OK")
</pallas_src>

<mosaic_0001>
module attributes {stable_mosaic.version = 11 : i64} {
  func.func @_connect_loss_kernel(%arg0: i32, %arg1: memref<16x128xf32, #tpu.memory_space<vmem>>, %arg2: memref<16x128xf32, #tpu.memory_space<vmem>>, %arg3: memref<1x8x128xf32, #tpu.memory_space<vmem>>, %arg4: memref<1x8x128xf32, #tpu.memory_space<vmem>>) attributes {dimension_semantics = [#tpu.dimension_semantics<parallel>], iteration_bounds = array<i64: 1>, scalar_prefetch = 0 : i64, scratch_operands = 0 : i64, tpu.core_type = #tpu.core_type<tc>, window_params = [{transform_indices = @transform_0, window_bounds = array<i64: 16, 128>}, {transform_indices = @transform_1, window_bounds = array<i64: 16, 128>}, {transform_indices = @transform_2, window_bounds = array<i64: 1, 8, 128>}, {transform_indices = @transform_3, window_bounds = array<i64: 1, 8, 128>}]} {
    %c0 = arith.constant 0 : index
    %c0_0 = arith.constant 0 : index
    %0 = vector.load %arg1[%c0, %c0_0] : memref<16x128xf32, #tpu.memory_space<vmem>>, vector<16x128xf32>
    %c0_1 = arith.constant 0 : index
    %c0_2 = arith.constant 0 : index
    %1 = vector.load %arg2[%c0_1, %c0_2] : memref<16x128xf32, #tpu.memory_space<vmem>>, vector<16x128xf32>
    %2 = tpu.iota {dimensions = array<i32: 0>} : vector<16x128xi32>
    %3 = tpu.iota {dimensions = array<i32: 1>} : vector<16x128xi32>
    %c16_i32 = arith.constant 16 : i32
    %c0_i32 = arith.constant 0 : i32
    %4 = arith.cmpi eq, %c16_i32, %c0_i32 : i32
    %c1_i32 = arith.constant 1 : i32
    %5 = arith.select %4, %c1_i32, %c16_i32 : i32
    %6 = vector.broadcast %5 : i32 to vector<16x128xi32>
    %7 = arith.remsi %3, %6 : vector<16x128xi32>
    %c0_i32_3 = arith.constant 0 : i32
    %8 = vector.broadcast %c0_i32_3 : i32 to vector<16x128xi32>
    %9 = arith.cmpi ne, %7, %8 : vector<16x128xi32>
    %c0_i32_4 = arith.constant 0 : i32
    %10 = vector.broadcast %c0_i32_4 : i32 to vector<16x128xi32>
    %11 = arith.cmpi slt, %7, %10 : vector<16x128xi32>
    %c0_i32_5 = arith.constant 0 : i32
    %12 = arith.cmpi slt, %5, %c0_i32_5 : i32
    %13 = vector.broadcast %12 : i1 to vector<16x128xi1>
    %14 = vector.broadcast %13 : vector<16x128xi1> to vector<16x128xi1>
    %15 = arith.xori %11, %14 : vector<16x128xi1>
    %16 = arith.andi %15, %9 : vector<16x128xi1>
    %17 = vector.broadcast %5 : i32 to vector<16x128xi32>
    %18 = arith.addi %7, %17 : vector<16x128xi32>
    %19 = arith.select %16, %18, %7 : vector<16x128xi1>, vector<16x128xi32>
    %c0_i32_6 = arith.constant 0 : i32
    %20 = vector.broadcast %c0_i32_6 : i32 to vector<16x128xi32>
    %21 = arith.cmpi eq, %2, %20 : vector<16x128xi32>
    %c15_i32 = arith.constant 15 : i32
    %22 = vector.broadcast %c15_i32 : i32 to vector<16x128xi32>
    %23 = arith.cmpi eq, %2, %22 : vector<16x128xi32>
    %c0_i32_7 = arith.constant 0 : i32
    %24 = vector.broadcast %c0_i32_7 : i32 to vector<16x128xi32>
    %25 = arith.cmpi eq, %19, %24 : vector<16x128xi32>
    %c15_i32_8 = arith.constant 15 : i32
    %26 = vector.broadcast %c15_i32_8 : i32 to vector<16x128xi32>
    %27 = arith.cmpi eq, %19, %26 : vector<16x128xi32>
    %c1_i32_9 = arith.constant 1 : i32
    %28 = tpu.dynamic_rotate %0 by %c1_i32_9 dim 0 : vector<16x128xf32>, i32 -> vector<16x128xf32>
    %cst = arith.constant 1.000000e+04 : f32
    %29 = vector.broadcast %cst : f32 to vector<16x128xf32>
    %30 = arith.select %21, %29, %28 : vector<16x128xi1>, vector<16x128xf32>
    %c15_i32_10 = arith.constant 15 : i32
    %31 = tpu.dynamic_rotate %0 by %c15_i32_10 dim 0 : vector<16x128xf32>, i32 -> vector<16x128xf32>
    %cst_11 = arith.constant 1.000000e+04 : f32
    %32 = vector.broadcast %cst_11 : f32 to vector<16x128xf32>
    %33 = arith.select %23, %32, %31 : vector<16x128xi1>, vector<16x128xf32>
    %c1_i32_12 = arith.constant 1 : i32
    %34 = tpu.dynamic_rotate %0 by %c1_i32_12 dim 1 : vector<16x128xf32>, i32 -> vector<16x128xf32>
    %cst_13 = arith.constant 1.000000e+04 : f32
    %35 = vector.broadcast %cst_13 : f32 to vector<16x128xf32>
    %36 = arith.select %25, %35, %34 : vector<16x128xi1>, vector<16x128xf32>
    %c127_i32 = arith.constant 127 : i32
    %37 = tpu.dynamic_rotate %0 by %c127_i32 dim 1 : vector<16x128xf32>, i32 -> vector<16x128xf32>
    %cst_14 = arith.constant 1.000000e+04 : f32
    %38 = vector.broadcast %cst_14 : f32 to vector<16x128xf32>
    %39 = arith.select %27, %38, %37 : vector<16x128xi1>, vector<16x128xf32>
    %40 = arith.minimumf %0, %30 : vector<16x128xf32>
    %41 = arith.minimumf %40, %33 : vector<16x128xf32>
    %42 = arith.minimumf %41, %36 : vector<16x128xf32>
    %43 = arith.minimumf %42, %39 : vector<16x128xf32>
    %c1_i32_15 = arith.constant 1 : i32
    %44 = tpu.dynamic_rotate %43 by %c1_i32_15 dim 0 : vector<16x128xf32>, i32 -> vector<16x128xf32>
    %cst_16 = arith.constant -1.000000e+04 : f32
    %45 = vector.broadcast %cst_16 : f32 to vector<16x128xf32>
    %46 = arith.select %21, %45, %44 : vector<16x128xi1>, vector<16x128xf32>
    %c15_i32_17 = arith.constant 15 : i32
    %47 = tpu.dynamic_rotate %43 by %c15_i32_17 dim 0 : vector<16x128xf32>, i32 -> vector<16x128xf32>
    %cst_18 = arith.constant -1.000000e+04 : f32
    %48 = vector.broadcast %cst_18 : f32 to vector<16x128xf32>
    %49 = arith.select %23, %48, %47 : vector<16x128xi1>, vector<16x128xf32>
    %c1_i32_19 = arith.constant 1 : i32
    %50 = tpu.dynamic_rotate %43 by %c1_i32_19 dim 1 : vector<16x128xf32>, i32 -> vector<16x128xf32>
    %cst_20 = arith.constant -1.000000e+04 : f32
    %51 = vector.broadcast %cst_20 : f32 to vector<16x128xf32>
    %52 = arith.select %25, %51, %50 : vector<16x128xi1>, vector<16x128xf32>
    %c127_i32_21 = arith.constant 127 : i32
    %53 = tpu.dynamic_rotate %43 by %c127_i32_21 dim 1 : vector<16x128xf32>, i32 -> vector<16x128xf32>
    %cst_22 = arith.constant -1.000000e+04 : f32
    %54 = vector.broadcast %cst_22 : f32 to vector<16x128xf32>
    %55 = arith.select %27, %54, %53 : vector<16x128xi1>, vector<16x128xf32>
    %56 = arith.maximumf %43, %46 : vector<16x128xf32>
    %57 = arith.maximumf %56, %49 : vector<16x128xf32>
    %58 = arith.maximumf %57, %52 : vector<16x128xf32>
    %59 = arith.maximumf %58, %55 : vector<16x128xf32>
    %cst_23 = arith.constant 5.000000e-01 : f32
    %60 = vector.broadcast %cst_23 : f32 to vector<16x128xf32>
    %61 = arith.subf %59, %60 : vector<16x128xf32>
    %cst_24 = arith.constant 1.000000e+01 : f32
    %62 = vector.broadcast %cst_24 : f32 to vector<16x128xf32>
    %63 = arith.mulf %62, %61 : vector<16x128xf32>
    %cst_25 = arith.constant 0.000000e+00 : f32
    %64 = vector.broadcast %cst_25 : f32 to vector<16x128xf32>
    %65 = arith.subf %64, %63 : vector<16x128xf32>
    %66 = math.exp %65 : vector<16x128xf32>
    %cst_26 = arith.constant 1.000000e+00 : f32
    %67 = vector.broadcast %cst_26 : f32 to vector<16x128xf32>
    %68 = arith.addf %67, %66 : vector<16x128xf32>
    %69 = tpu.reciprocal %68 : vector<16x128xf32> -> vector<16x128xf32>
    %c1_i32_27 = arith.constant 1 : i32
    %70 = tpu.dynamic_rotate %1 by %c1_i32_27 dim 0 : vector<16x128xf32>, i32 -> vector<16x128xf32>
    %cst_28 = arith.constant 1.000000e+04 : f32
    %71 = vector.broadcast %cst_28 : f32 to vector<16x128xf32>
    %72 = arith.select %21, %71, %70 : vector<16x128xi1>, vector<16x128xf32>
    %c15_i32_29 = arith.constant 15 : i32
    %73 = tpu.dynamic_rotate %1 by %c15_i32_29 dim 0 : vector<16x128xf32>, i32 -> vector<16x128xf32>
    %cst_30 = arith.constant 1.000000e+04 : f32
    %74 = vector.broadcast %cst_30 : f32 to vector<16x128xf32>
    %75 = arith.select %23, %74, %73 : vector<16x128xi1>, vector<16x128xf32>
    %c1_i32_31 = arith.constant 1 : i32
    %76 = tpu.dynamic_rotate %1 by %c1_i32_31 dim 1 : vector<16x128xf32>, i32 -> vector<16x128xf32>
    %cst_32 = arith.constant 1.000000e+04 : f32
    %77 = vector.broadcast %cst_32 : f32 to vector<16x128xf32>
    %78 = arith.select %25, %77, %76 : vector<16x128xi1>, vector<16x128xf32>
    %c127_i32_33 = arith.constant 127 : i32
    %79 = tpu.dynamic_rotate %1 by %c127_i32_33 dim 1 : vector<16x128xf32>, i32 -> vector<16x128xf32>
    %cst_34 = arith.constant 1.000000e+04 : f32
    %80 = vector.broadcast %cst_34 : f32 to vector<16x128xf32>
    %81 = arith.select %27, %80, %79 : vector<16x128xi1>, vector<16x128xf32>
    %82 = arith.minimumf %1, %72 : vector<16x128xf32>
    %83 = arith.minimumf %82, %75 : vector<16x128xf32>
    %84 = arith.minimumf %83, %78 : vector<16x128xf32>
    %85 = arith.minimumf %84, %81 : vector<16x128xf32>
    %c1_i32_35 = arith.constant 1 : i32
    %86 = tpu.dynamic_rotate %85 by %c1_i32_35 dim 0 : vector<16x128xf32>, i32 -> vector<16x128xf32>
    %cst_36 = arith.constant -1.000000e+04 : f32
    %87 = vector.broadcast %cst_36 : f32 to vector<16x128xf32>
    %88 = arith.select %21, %87, %86 : vector<16x128xi1>, vector<16x128xf32>
    %c15_i32_37 = arith.constant 15 : i32
    %89 = tpu.dynamic_rotate %85 by %c15_i32_37 dim 0 : vector<16x128xf32>, i32 -> vector<16x128xf32>
    %cst_38 = arith.constant -1.000000e+04 : f32
    %90 = vector.broadcast %cst_38 : f32 to vector<16x128xf32>
    %91 = arith.select %23, %90, %89 : vector<16x128xi1>, vector<16x128xf32>
    %c1_i32_39 = arith.constant 1 : i32
    %92 = tpu.dynamic_rotate %85 by %c1_i32_39 dim 1 : vector<16x128xf32>, i32 -> vector<16x128xf32>
    %cst_40 = arith.constant -1.000000e+04 : f32
    %93 = vector.broadcast %cst_40 : f32 to vector<16x128xf32>
    %94 = arith.select %25, %93, %92 : vector<16x128xi1>, vector<16x128xf32>
    %c127_i32_41 = arith.constant 127 : i32
    %95 = tpu.dynamic_rotate %85 by %c127_i32_41 dim 1 : vector<16x128xf32>, i32 -> vector<16x128xf32>
    %cst_42 = arith.constant -1.000000e+04 : f32
    %96 = vector.broadcast %cst_42 : f32 to vector<16x128xf32>
    %97 = arith.select %27, %96, %95 : vector<16x128xi1>, vector<16x128xf32>
    %98 = arith.maximumf %85, %88 : vector<16x128xf32>
    %99 = arith.maximumf %98, %91 : vector<16x128xf32>
    %100 = arith.maximumf %99, %94 : vector<16x128xf32>
    %101 = arith.maximumf %100, %97 : vector<16x128xf32>
    %cst_43 = arith.constant 5.000000e-01 : f32
    %102 = vector.broadcast %cst_43 : f32 to vector<16x128xf32>
    %103 = arith.subf %101, %102 : vector<16x128xf32>
    %cst_44 = arith.constant 1.000000e+01 : f32
    %104 = vector.broadcast %cst_44 : f32 to vector<16x128xf32>
    %105 = arith.mulf %104, %103 : vector<16x128xf32>
    %cst_45 = arith.constant 0.000000e+00 : f32
    %106 = vector.broadcast %cst_45 : f32 to vector<16x128xf32>
    %107 = arith.subf %106, %105 : vector<16x128xf32>
    %108 = math.exp %107 : vector<16x128xf32>
    %cst_46 = arith.constant 1.000000e+00 : f32
    %109 = vector.broadcast %cst_46 : f32 to vector<16x128xf32>
    %110 = arith.addf %109, %108 : vector<16x128xf32>
    %111 = tpu.reciprocal %110 : vector<16x128xf32> -> vector<16x128xf32>
    %c127_i32_47 = arith.constant 127 : i32
    %112 = tpu.dynamic_rotate %69 by %c127_i32_47 dim 1 : vector<16x128xf32>, i32 -> vector<16x128xf32>
    %113 = arith.subf %112, %69 : vector<16x128xf32>
    %cst_48 = arith.constant 0.000000e+00 : f32
    %114 = vector.broadcast %cst_48 : f32 to vector<16x128xf32>
    %115 = arith.select %27, %114, %113 : vector<16x128xi1>, vector<16x128xf32>
    %c15_i32_49 = arith.constant 15 : i32
    %116 = tpu.dynamic_rotate %69 by %c15_i32_49 dim 0 : vector<16x128xf32>, i32 -> vector<16x128xf32>
    %117 = arith.subf %116, %69 : vector<16x128xf32>
    %cst_50 = arith.constant 0.000000e+00 : f32
    %118 = vector.broadcast %cst_50 : f32 to vector<16x128xf32>
    %119 = arith.select %23, %118, %117 : vector<16x128xi1>, vector<16x128xf32>
    %120 = math.absf %115 : vector<16x128xf32>
    %121 = math.absf %119 : vector<16x128xf32>
    %c127_i32_51 = arith.constant 127 : i32
    %122 = tpu.dynamic_rotate %111 by %c127_i32_51 dim 1 : vector<16x128xf32>, i32 -> vector<16x128xf32>
    %123 = arith.subf %122, %111 : vector<16x128xf32>
    %cst_52 = arith.constant 0.000000e+00 : f32
    %124 = vector.broadcast %cst_52 : f32 to vector<16x128xf32>
    %125 = arith.select %27, %124, %123 : vector<16x128xi1>, vector<16x128xf32>
    %c15_i32_53 = arith.constant 15 : i32
    %126 = tpu.dynamic_rotate %111 by %c15_i32_53 dim 0 : vector<16x128xf32>, i32 -> vector<16x128xf32>
    %127 = arith.subf %126, %111 : vector<16x128xf32>
    %cst_54 = arith.constant 0.000000e+00 : f32
    %128 = vector.broadcast %cst_54 : f32 to vector<16x128xf32>
    %129 = arith.select %23, %128, %127 : vector<16x128xi1>, vector<16x128xf32>
    %130 = math.absf %125 : vector<16x128xf32>
    %131 = math.absf %129 : vector<16x128xf32>
    %132 = arith.subf %120, %130 : vector<16x128xf32>
    %cst_55 = arith.constant 5.2083336E-4 : f32
    %133 = vector.broadcast %cst_55 : f32 to vector<16x128xf32>
    %134 = arith.mulf %132, %133 : vector<16x128xf32>
    %135 = arith.subf %121, %131 : vector<16x128xf32>
    %cst_56 = arith.constant 5.2083336E-4 : f32
    %136 = vector.broadcast %cst_56 : f32 to vector<16x128xf32>
    %137 = arith.mulf %135, %136 : vector<16x128xf32>
    %138 = arith.addf %134, %137 : vector<16x128xf32>
    %139 = vector.shape_cast %138 : vector<16x128xf32> to vector<1x16x128xf32>
    %cst_57 = arith.constant dense<0.000000e+00> : vector<1xf32>
    %140 = vector.multi_reduction <add>, %139, %cst_57 [1, 2] : vector<1x16x128xf32> to vector<1xf32>
    %141 = vector.shape_cast %140 : vector<1xf32> to vector<1x1x1xf32>
    %142 = vector.extract %141[0, 0, 0] : f32 from vector<1x1x1xf32>
    %cst_58 = arith.constant 0.000000e+00 : f32
    %143 = vector.broadcast %cst_58 : f32 to vector<16x128xf32>
    %144 = arith.cmpf one, %111, %143 : vector<16x128xf32>
    %145 = arith.extui %144 : vector<16x128xi1> to vector<16x128xi32>
    %146 = arith.sitofp %145 : vector<16x128xi32> to vector<16x128xf32>
    %147 = vector.shape_cast %146 : vector<16x128xf32> to vector<1x16x128xf32>
    %cst_59 = arith.constant dense<0.000000e+00> : vector<1xf32>
    %148 = vector.multi_reduction <add>, %147, %cst_59 [1, 2] : vector<1x16x128xf32> to vector<1xf32>
    %149 = vector.shape_cast %148 : vector<1xf32> to vector<1x1x1xf32>
    %150 = vector.extract %149[0, 0, 0] : f32 from vector<1x1x1xf32>
    %151 = vector.broadcast %142 : f32 to vector<1x8x128xf32>
    %c0_60 = arith.constant 0 : index
    %c0_61 = arith.constant 0 : index
    %c0_62 = arith.constant 0 : index
    %152 = vector.load %arg3[%c0_60, %c0_61, %c0_62] : memref<1x8x128xf32, #tpu.memory_space<vmem>>, vector<1x8x128xf32>
    tpu.vector_store %arg3[%c0_60, %c0_61, %c0_62], %151 {strides = array<i32>} : memref<1x8x128xf32, #tpu.memory_space<vmem>>, vector<1x8x128xf32>,
    %153 = vector.broadcast %150 : f32 to vector<1x8x128xf32>
    %c0_63 = arith.constant 0 : index
    %c0_64 = arith.constant 0 : index
    %c0_65 = arith.constant 0 : index
    %154 = vector.load %arg4[%c0_63, %c0_64, %c0_65] : memref<1x8x128xf32, #tpu.memory_space<vmem>>, vector<1x8x128xf32>
    tpu.vector_store %arg4[%c0_63, %c0_64, %c0_65], %153 {strides = array<i32>} : memref<1x8x128xf32, #tpu.memory_space<vmem>>, vector<1x8x128xf32>,
    return
  }
  func.func @transform_0(%arg0: i32) -> (i32, i32) {
    %c0_i32 = arith.constant 0 : i32
    %c0_i32_0 = arith.constant 0 : i32
    return %c0_i32, %arg0 : i32, i32
  }
  func.func @transform_1(%arg0: i32) -> (i32, i32) {
    %c0_i32 = arith.constant 0 : i32
    %c0_i32_0 = arith.constant 0 : i32
    return %c0_i32, %arg0 : i32, i32
  }
  func.func @transform_2(%arg0: i32) -> (i32, i32, i32) {
    %c0_i32 = arith.constant 0 : i32
    %c0_i32_0 = arith.constant 0 : i32
    %c0_i32_1 = arith.constant 0 : i32
    return %arg0, %c0_i32, %c0_i32_0 : i32, i32, i32
  }
  func.func @transform_3(%arg0: i32) -> (i32, i32, i32) {
    %c0_i32 = arith.constant 0 : i32
    %c0_i32_0 = arith.constant 0 : i32
    %c0_i32_1 = arith.constant 0 : i32
    return %arg0, %c0_i32, %c0_i32_0 : i32, i32, i32
  }
}

</mosaic_0001>

<llo_original>
// kernel: connect_loss.1
$region0: #{connect_loss.1}
  #allocation0 [shape = 'u32[]', space=smem, size = 0x4, offset = 0x4, fixed_abs, tag = 'smem constant byte address 0x4 - core index']
  #allocation1 [shape = 'u32[144,128]{1,0:T(1,128)}', space=vmem, size = 0x12000, scoped, tag = 'internal scratch']
  %s0 = inlined_call_operand.vmem [shape: f32[16,128], index: 0, kind: input, shape index: {}]
  %s1 = inlined_call_operand.vmem [shape: f32[16,128], index: 1, kind: input, shape index: {}]
  %s2 = inlined_call_operand.vmem [shape: f32[1,8,128], index: 2, kind: output, shape index: {0}]
  %s3 = inlined_call_operand.vmem [shape: f32[1,8,128], index: 3, kind: output, shape index: {1}]
  %4 = xla_tuple %s2, %s3
  %s5 = sld [smem:[#allocation0]]
  $region26: #{connect_loss.1} parent=0
    _
  %s7 = ssub.s32 1, %s5
  %s8 = scalar_select 0, %s7, %s5
  // Predicated region
  $region2: #{connect_loss.1} parent=0 // pred_check
    _
  $region3: #{connect_loss.1} parent=0 // pred_check_branch
    %10 = sbr.rel (0) target = $region5
  $region4: #{connect_loss.1} parent=0 // pred_region
    _
  $region5: #{connect_loss.1} parent=0 // pred_fallthru
    _
  // Predicated region
  $region6: #{connect_loss.1} parent=0 // pred_check
    _
  $region7: #{connect_loss.1} parent=0 // pred_check_branch
    %12 = sbr.rel (0) target = $region9
  $region8: #{connect_loss.1} parent=0 // pred_region
    _
  $region9: #{connect_loss.1} parent=0 // pred_fallthru
    _
  %v13 = vld [vmem:[%s0] sm:$0xff]
  %v14 = vld [vmem:[%s0 + $0x8] sm:$0xff]
  %v15 = vld [vmem:[%s1] sm:$0xff]
  %v16 = vld [vmem:[%s1 + $0x8] sm:$0xff]
  %v17 = vlaneseq
  %v18 = vshrl.u32 %v17, 7
  %v19 = vadd.s32 %v18, 8
  %v20 = vlaneseq
  %v21 = vand.u32 %v20, 127
  %vm22 = vcmp.lt.s32.totalorder %v21, 0
  %v23 = vsub.s32 0, %v21
  %v24 = vsel %vm22, %v23, %v21
  %v25 = vshrl.u32 %v24, 4
  %v26 = vand.u32 %v24, 15
  %v27 = vsub.s32 0, %v26
  %v28 = vsel %vm22, %v27, %v26
  %vm29 = vcmp.ne.s32.totalorder %v28, 0
  %vm30 = vcmp.lt.s32.totalorder %v28, 0
  %vm31 = vmand %vm30, %vm29
  %v32 = vadd.s32 %v28, 16
  %v33 = vsel %vm31, %v32, %v28
  %vm34 = vcmp.eq.s32.totalorder %v18, 0
  %vm35 = vcmp.eq.s32.totalorder %v19, 0
  %vm36 = vcmp.eq.s32.totalorder %v18, 15
  %vm37 = vcmp.eq.s32.totalorder %v19, 15
  %vm38 = vcmp.eq.s32.totalorder %v33, 0
  %vm39 = vcmp.eq.s32.totalorder %v33, 15
  %v40 = vrot.slane %v13, 7
  %v41 = vrot.slane %v14, 7
  %vm42 = vcmp.lt.s32.totalorder %v18, 1
  %v43 = vsel %vm42, %v40, %v41
  %v44 = vsel %vm42, %v41, %v40
  %v45 = vsel %vm34, 10000.0, %v44
  %v46 = vsel %vm35, 10000.0, %v43
  %v47 = vrot.slane %v13, 1
  %v48 = vrot.slane %v14, 1
  %vm49 = vcmp.lt.s32.totalorder %v18, 7
  %v50 = vsel %vm49, %v47, %v48
  %v51 = vsel %vm49, %v48, %v47
  %v52 = vsel %vm36, 10000.0, %v50
  %v53 = vsel %vm37, 10000.0, %v51
  %54 = vrot.lane.b32.xlu0 %v13, 1
  %v55 = vpop.permute.xlu0 %54
  %56 = vrot.lane.b32.xlu0 %v14, 1
  %v57 = vpop.permute.xlu0 %56
  %v58 = vsel %vm38, 10000.0, %v55
  %v59 = vsel %vm38, 10000.0, %v57
  %60 = vrot.lane.b32.xlu0 %v13, 127
  %v61 = vpop.permute.xlu0 %60
  %62 = vrot.lane.b32.xlu0 %v14, 127
  %v63 = vpop.permute.xlu0 %62
  %v64 = vsel %vm39, 10000.0, %v61
  %v65 = vsel %vm39, 10000.0, %v63
  %v66 = vmin.f32 %v13, %v45
  %v67 = vmin.f32 %v14, %v46
  %v68 = vmin.f32 %v66, %v52
  %v69 = vmin.f32 %v67, %v53
  %v70 = vmin.f32 %v68, %v58
  %v71 = vmin.f32 %v69, %v59
  %v72 = vmin.f32 %v70, %v64
  %v73 = vmin.f32 %v71, %v65
  %v74 = vrot.slane %v72, 7
  %v75 = vrot.slane %v73, 7
  %v76 = vsel %vm42, %v74, %v75
  %v77 = vsel %vm42, %v75, %v74
  %v78 = vsel %vm34, -10000.0, %v77
  %v79 = vsel %vm35, -10000.0, %v76
  %v80 = vrot.slane %v72, 1
  %v81 = vrot.slane %v73, 1
  %v82 = vsel %vm49, %v80, %v81
  %v83 = vsel %vm49, %v81, %v80
  %v84 = vsel %vm36, -10000.0, %v82
  %v85 = vsel %vm37, -10000.0, %v83
  %86 = vrot.lane.b32.xlu0 %v72, 1
  %v87 = vpop.permute.xlu0 %86
  %88 = vrot.lane.b32.xlu0 %v73, 1
  %v89 = vpop.permute.xlu0 %88
  %v90 = vsel %vm38, -10000.0, %v87
  %v91 = vsel %vm38, -10000.0, %v89
  %92 = vrot.lane.b32.xlu0 %v72, 127
  %v93 = vpop.permute.xlu0 %92
  %94 = vrot.lane.b32.xlu0 %v73, 127
  %v95 = vpop.permute.xlu0 %94
  %v96 = vsel %vm39, -10000.0, %v93
  %v97 = vsel %vm39, -10000.0, %v95
  %v98 = vmax.f32 %v72, %v78
  %v99 = vmax.f32 %v73, %v79
  %v100 = vmax.f32 %v98, %v84
  %v101 = vmax.f32 %v99, %v85
  %v102 = vmax.f32 %v100, %v90
  %v103 = vmax.f32 %v101, %v91
  %v104 = vmax.f32 %v102, %v96
  %v105 = vmax.f32 %v103, %v97
  %v106 = vsub.f32 %v104, 0.5
  %v107 = vsub.f32 %v105, 0.5
  %v108 = vmul.f32 %v106, 10.0
  %v109 = vmul.f32 %v107, 10.0
  %v110 = vsub.f32 0.0, %v108
  %v111 = vsub.f32 0.0, %v109
  %v112 = vmul.f32 %v110, 1.442695
  %v113 = vpow.pop %v112
  %v114 = vmul.f32 %v111, 1.442695
  %v115 = vpow.pop %v114
  %v116 = vadd.f32 %v113, 1.0
  %v117 = vadd.f32 %v115, 1.0
  %v118 = vrcp.pop %v116
  %v119 = vrcp.pop %v117
  %v120 = vrot.slane %v15, 7
  %v121 = vrot.slane %v16, 7
  %v122 = vsel %vm42, %v120, %v121
  %v123 = vsel %vm42, %v121, %v120
  %v124 = vsel %vm34, 10000.0, %v123
  %v125 = vsel %vm35, 10000.0, %v122
  %v126 = vrot.slane %v15, 1
  %v127 = vrot.slane %v16, 1
  %v128 = vsel %vm49, %v126, %v127
  %v129 = vsel %vm49, %v127, %v126
  %v130 = vsel %vm36, 10000.0, %v128
  %v131 = vsel %vm37, 10000.0, %v129
  %132 = vrot.lane.b32.xlu0 %v15, 1
  %v133 = vpop.permute.xlu0 %132
  %134 = vrot.lane.b32.xlu0 %v16, 1
  %v135 = vpop.permute.xlu0 %134
  %v136 = vsel %vm38, 10000.0, %v133
  %v137 = vsel %vm38, 10000.0, %v135
  %138 = vrot.lane.b32.xlu0 %v15, 127
  %v139 = vpop.permute.xlu0 %138
  %140 = vrot.lane.b32.xlu0 %v16, 127
  %v141 = vpop.permute.xlu0 %140
  %v142 = vsel %vm39, 10000.0, %v139
  %v143 = vsel %vm39, 10000.0, %v141
  %v144 = vmin.f32 %v15, %v124
  %v145 = vmin.f32 %v16, %v125
  %v146 = vmin.f32 %v144, %v130
  %v147 = vmin.f32 %v145, %v131
  %v148 = vmin.f32 %v146, %v136
  %v149 = vmin.f32 %v147, %v137
  %v150 = vmin.f32 %v148, %v142
  %v151 = vmin.f32 %v149, %v143
  %v152 = vrot.slane %v150, 7
  %v153 = vrot.slane %v151, 7
  %v154 = vsel %vm42, %v152, %v153
  %v155 = vsel %vm42, %v153, %v152
  %v156 = vsel %vm34, -10000.0, %v155
  %v157 = vsel %vm35, -10000.0, %v154
  %v158 = vrot.slane %v150, 1
  %v159 = vrot.slane %v151, 1
  %v160 = vsel %vm49, %v158, %v159
  %v161 = vsel %vm49, %v159, %v158
  %v162 = vsel %vm36, -10000.0, %v160
  %v163 = vsel %vm37, -10000.0, %v161
  %164 = vrot.lane.b32.xlu0 %v150, 1
  %v165 = vpop.permute.xlu0 %164
  %166 = vrot.lane.b32.xlu0 %v151, 1
  %v167 = vpop.permute.xlu0 %166
  %v168 = vsel %vm38, -10000.0, %v165
  %v169 = vsel %vm38, -10000.0, %v167
  %170 = vrot.lane.b32.xlu0 %v150, 127
  %v171 = vpop.permute.xlu0 %170
  %172 = vrot.lane.b32.xlu0 %v151, 127
  %v173 = vpop.permute.xlu0 %172
  %v174 = vsel %vm39, -10000.0, %v171
  %v175 = vsel %vm39, -10000.0, %v173
  %v176 = vmax.f32 %v150, %v156
  %v177 = vmax.f32 %v151, %v157
  %v178 = vmax.f32 %v176, %v162
  %v179 = vmax.f32 %v177, %v163
  %v180 = vmax.f32 %v178, %v168
  %v181 = vmax.f32 %v179, %v169
  %v182 = vmax.f32 %v180, %v174
  %v183 = vmax.f32 %v181, %v175
  %v184 = vsub.f32 %v182, 0.5
  %v185 = vsub.f32 %v183, 0.5
  %v186 = vmul.f32 %v184, 10.0
  %v187 = vmul.f32 %v185, 10.0
  %v188 = vsub.f32 0.0, %v186
  %v189 = vsub.f32 0.0, %v187
  %v190 = vmul.f32 %v188, 1.442695
  %v191 = vpow.pop %v190
  %v192 = vmul.f32 %v189, 1.442695
  %v193 = vpow.pop %v192
  %v194 = vadd.f32 %v191, 1.0
  %v195 = vadd.f32 %v193, 1.0
  %v196 = vrcp.pop %v194
  %v197 = vrcp.pop %v195
  %198 = vrot.lane.b32.xlu0 %v118, 127
  %v199 = vpop.permute.xlu0 %198
  %200 = vrot.lane.b32.xlu0 %v119, 127
  %v201 = vpop.permute.xlu0 %200
  %v202 = vsub.f32 %v199, %v118
  %v203 = vsub.f32 %v201, %v119
  %v204 = vsel %vm39, 0.0, %v202
  %v205 = vsel %vm39, 0.0, %v203
  %v206 = vrot.slane %v118, 1
  %v207 = vrot.slane %v119, 1
  %v208 = vsel %vm49, %v206, %v207
  %v209 = vsel %vm49, %v207, %v206
  %v210 = vsub.f32 %v208, %v118
  %v211 = vsub.f32 %v209, %v119
  %v212 = vsel %vm36, 0.0, %v210
  %v213 = vsel %vm37, 0.0, %v211
  %v214 = vand.u32 2147483647, %v204
  %v215 = vand.u32 2147483647, %v205
  %v216 = vand.u32 2147483647, %v212
  %v217 = vand.u32 2147483647, %v213
  %218 = vrot.lane.b32.xlu0 %v196, 127
  %v219 = vpop.permute.xlu0 %218
  %220 = vrot.lane.b32.xlu0 %v197, 127
  %v221 = vpop.permute.xlu0 %220
  %v222 = vsub.f32 %v219, %v196
  %v223 = vsub.f32 %v221, %v197
  %v224 = vsel %vm39, 0.0, %v222
  %v225 = vsel %vm39, 0.0, %v223
  %v226 = vrot.slane %v196, 1
  %v227 = vrot.slane %v197, 1
  %v228 = vsel %vm49, %v226, %v227
  %v229 = vsel %vm49, %v227, %v226
  %v230 = vsub.f32 %v228, %v196
  %v231 = vsub.f32 %v229, %v197
  %v232 = vsel %vm36, 0.0, %v230
  %v233 = vsel %vm37, 0.0, %v231
  %v234 = vand.u32 2147483647, %v224
  %v235 = vand.u32 2147483647, %v225
  %v236 = vand.u32 2147483647, %v232
  %v237 = vand.u32 2147483647, %v233
  %v238 = vsub.f32 %v214, %v234
  %v239 = vsub.f32 %v215, %v235
  %v240 = vmul.f32 %v238, 0.00052083336
  %v241 = vmul.f32 %v239, 0.00052083336
  %v242 = vsub.f32 %v216, %v236
  %v243 = vsub.f32 %v217, %v237
  %v244 = vmul.f32 %v242, 0.00052083336
  %v245 = vmul.f32 %v243, 0.00052083336
  %v246 = vadd.f32 %v240, %v244
  %v247 = vadd.f32 %v241, %v245
  %v248 = vadd.f32 %v246, %v247
  %249 = vadd.xlane.f32.xlu0 %v248
  %v250 = vpop.xlane.xlu0 %249
  %v251 = vrot.slane %v250, 4
  %v252 = vadd.f32 %v250, %v251
  %v253 = vrot.slane %v252, 2
  %v254 = vadd.f32 %v252, %v253
  %v255 = vrot.slane %v254, 1
  %v256 = vadd.f32 %v254, %v255
  %s257 = vtos %v256
  %vm258 = vcmp.ne.f32.partialorder %v196, 0.0
  %vm259 = vcmp.ne.f32.partialorder %v197, 0.0
  %v260 = vsel %vm258, 1, 0
  %v261 = vsel %vm259, 1, 0
  %v262 = vcvt.s32.f32 %v260
  %v263 = vcvt.s32.f32 %v261
  %v264 = vadd.f32 %v262, %v263
  %265 = vadd.xlane.f32.xlu0 %v264
  %v266 = vpop.xlane.xlu0 %265
  %v267 = vrot.slane %v266, 4
  %v268 = vadd.f32 %v266, %v267
  %v269 = vrot.slane %v268, 2
  %v270 = vadd.f32 %v268, %v269
  %v271 = vrot.slane %v270, 1
  %v272 = vadd.f32 %v270, %v271
  %s273 = vtos %v272
  %v274 = vstv %s257
  %275 = vst [vmem:[%s2] sm:$0xff] %v274
  %v276 = vstv %s273
  %277 = vst [vmem:[%s3] sm:$0xff] %v276
  // Predicated region
  $region10: #{connect_loss.1} parent=0 // pred_check
    _
  $region11: #{connect_loss.1} parent=0 // pred_check_branch
    %279 = sbr.rel (0) target = $region13
  $region12: #{connect_loss.1} parent=0 // pred_region
    _
  $region13: #{connect_loss.1} parent=0 // pred_fallthru
    _
  // Predicated region
  $region14: #{connect_loss.1} parent=0 // pred_check
    _
  $region15: #{connect_loss.1} parent=0 // pred_check_branch
    %281 = sbr.rel (0) target = $region17
  $region16: #{connect_loss.1} parent=0 // pred_region
    _
  $region17: #{connect_loss.1} parent=0 // pred_fallthru
    _
  // Predicated region
  $region18: #{connect_loss.1} parent=0 // pred_check
    _
  $region19: #{connect_loss.1} parent=0 // pred_check_branch
    %283 = sbr.rel (0) target = $region21
  $region20: #{connect_loss.1} parent=0 // pred_region
    _
  $region21: #{connect_loss.1} parent=0 // pred_fallthru
    _
  // Predicated region
  $region22: #{connect_loss.1} parent=0 // pred_check
    _
  $region23: #{connect_loss.1} parent=0 // pred_check_branch
    %285 = sbr.rel (0) target = $region25
  $region24: #{connect_loss.1} parent=0 // pred_region
    _
  $region25: #{connect_loss.1} parent=0 // pred_fallthru
    _

</llo_original>
